<compile_context>
chip_gen: v5e
topology: v5e:2x2
jax: 0.10.0
libtpu: 0.0.40
codegen_flags: <defaults>
</compile_context>

<pallas_src>
import functools

import jax
import jax.numpy as jnp
from jax.experimental import pallas as pl
from jax.experimental.pallas import tpu as pltpu


# Keep the double-buffered working set under this budget so the kernel fits
# comfortably on every generation (v7x has only 64 MiB of VMEM per TensorCore).
_VMEM_BUDGET_BYTES = 40 * 1024 * 1024
# Scoped-VMEM limit handed to Mosaic (the 16/32 MiB defaults would reject the
# larger tiles); 48 MiB still leaves headroom even on v7x.
_VMEM_LIMIT_BYTES = 48 * 1024 * 1024


def _self_expression_kernel(c_ref, x_ref, o_ref):
    """One (tm, tn) output tile with the full K reduction in a single MXU stream."""
    o_ref[...] = jnp.dot(
        c_ref[...], x_ref[...], preferred_element_type=jnp.float32
    ).astype(o_ref.dtype)


def _self_expression_acc_kernel(c_ref, x_ref, o_ref, acc_ref):
    """One (tm, tn) output tile; grid axis 2 iterates over the K (=n) reduction."""

    @pl.when(pl.program_id(2) == 0)
    def _():
        acc_ref[...] = jnp.zeros_like(acc_ref)

    acc_ref[...] += jnp.dot(
        c_ref[...], x_ref[...], preferred_element_type=jnp.float32
    )

    @pl.when(pl.program_id(2) == pl.num_programs(2) - 1)
    def _():
        o_ref[...] = acc_ref[...].astype(o_ref.dtype)


def _pick_tile(dim, candidates):
    """Largest candidate that divides `dim`; else the full dim (always legal)."""
    for t in candidates:
        if dim % t == 0:
            return t
    return dim


def _vmem_bytes(tm, tn, tk, in_itemsize, out_itemsize, has_acc):
    # 2x for double buffering of the pipelined inputs / output.
    b = 2 * (tm * tk + tk * tn) * in_itemsize + 2 * tm * tn * out_itemsize
    if has_acc:
        b += tm * tn * 4  # f32 accumulator scratch
    return b


def _choose_tiles(n, k, d, in_itemsize, out_itemsize):
    # Lane-dense output tiles (large tn, multiple of 128) are the biggest single
    # lever (unmasked vst); tm is kept 128/256-aligned for the MXU.
    tn = _pick_tile(d, (1024, 512, 256, 128))
    tm = _pick_tile(n, (512, 256, 128))
    # Prefer collapsing the K axis entirely: no accumulator, no reduction axis,
    # no per-step init/finalize overhead.
    if _vmem_bytes(tm, tn, k, in_itemsize, out_itemsize, False) <= _VMEM_BUDGET_BYTES:
        return tm, tn, k
    tk = _pick_tile(k, (2048, 1024, 512, 256, 128))

    def fits():
        return _vmem_bytes(tm, tn, tk, in_itemsize, out_itemsize, True) <= _VMEM_BUDGET_BYTES

    while not fits() and (tn // 2) % 128 == 0 and d % (tn // 2) == 0:
        tn //= 2
    while not fits() and (tk // 2) % 128 == 0 and k % (tk // 2) == 0:
        tk //= 2
    while not fits() and (tm // 2) % 128 == 0 and n % (tm // 2) == 0:
        tm //= 2
    return tm, tn, tk


@functools.partial(jax.jit, static_argnames=("tm", "tn", "tk", "compute_dtype"))
def self_expression(coefficient, x, *, tm=None, tn=None, tk=None, compute_dtype=None):
    """y = coefficient @ x via a tiled Pallas matmul.

    coefficient: (n, n)
    x:           (n, d)
    returns:     (n, d) in x.dtype
    compute_dtype: optionally cast inputs (e.g. jnp.bfloat16) before the MXU;
                   accumulation stays f32 and the output keeps x.dtype.
    """
    n, k = coefficient.shape
    k2, d = x.shape
    assert k == k2, "inner dims must match"

    out_dtype = x.dtype
    if compute_dtype is not None:
        coefficient = coefficient.astype(compute_dtype)
        x = x.astype(compute_dtype)
    in_itemsize = jnp.dtype(coefficient.dtype).itemsize
    out_itemsize = jnp.dtype(out_dtype).itemsize

    explicit = tm is not None or tn is not None or tk is not None
    a_tm, a_tn, a_tk = _choose_tiles(n, k, d, in_itemsize, out_itemsize)
    tm = a_tm if tm is None else tm
    tn = a_tn if tn is None else tn
    tk = a_tk if tk is None else tk
    use_acc = tk < k  # reduction grid axis only when K does not fit in one tile

    if (not explicit) and _vmem_bytes(tm, tn, tk, in_itemsize, out_itemsize, use_acc) > _VMEM_BUDGET_BYTES:
        # TODO(synk): huge non-128-aligned shapes would need masked edge tiles;
        # fall back to XLA there rather than risking a VMEM OOM.
        return jnp.dot(coefficient, x, preferred_element_type=jnp.float32).astype(out_dtype)

    assert n % tm == 0 and d % tn == 0 and k % tk == 0, "shapes must tile evenly"

    # Advisory cost hint so XLA schedules around the custom call sensibly.
    cost = pl.CostEstimate(
        flops=2 * n * k * d,
        transcendentals=0,
        bytes_accessed=(n * k + k * d) * in_itemsize + n * d * out_itemsize,
    )

    if not use_acc:
        # Full-K tiles: one clean MXU stream per output tile, no accumulator.
        # (Also covers the small-problem case, where the grid degenerates to (1, 1).)
        return pl.pallas_call(
            _self_expression_kernel,
            out_shape=jax.ShapeDtypeStruct((n, d), out_dtype),
            grid_spec=pltpu.PrefetchScalarGridSpec(
                num_scalar_prefetch=0,
                grid=(n // tm, d // tn),
                in_specs=[
                    # Coefficient row-panel: index depends only on i, so it stays
                    # resident in VMEM across the inner j sweep.
                    pl.BlockSpec((tm, k), lambda i, j: (i, 0)),
                    pl.BlockSpec((k, tn), lambda i, j: (0, j)),  # x column-panel
                ],
                out_specs=pl.BlockSpec((tm, tn), lambda i, j: (i, j)),
            ),
            compiler_params=pltpu.CompilerParams(
                dimension_semantics=("parallel", "parallel"),
                vmem_limit_bytes=_VMEM_LIMIT_BYTES,
            ),
            cost_estimate=cost,
        )(coefficient, x)

    # Large-K path: 3-D grid, reduction axis last, f32 accumulator in VMEM.
    return pl.pallas_call(
        _self_expression_acc_kernel,
        out_shape=jax.ShapeDtypeStruct((n, d), out_dtype),
        grid_spec=pltpu.PrefetchScalarGridSpec(
            num_scalar_prefetch=0,
            grid=(n // tm, d // tn, k // tk),
            in_specs=[
                pl.BlockSpec((tm, tk), lambda i, j, kk: (i, kk)),  # Coefficient tile
                pl.BlockSpec((tk, tn), lambda i, j, kk: (kk, j)),  # x tile
            ],
            out_specs=pl.BlockSpec((tm, tn), lambda i, j, kk: (i, j)),
            scratch_shapes=[pltpu.VMEM((tm, tn), jnp.float32)],
        ),
        compiler_params=pltpu.CompilerParams(
            dimension_semantics=("parallel", "parallel", "arbitrary"),
            vmem_limit_bytes=_VMEM_LIMIT_BYTES,
        ),
        cost_estimate=cost,
    )(coefficient, x)


if __name__ == "__main__":
    # Small, deterministic problem: n samples, feature dim d.
    n = 128
    d = 256
    weight_c = 1e-4  # same role as the PyTorch module's weight_c scale

    key = jax.random.PRNGKey(0)
    k_coef, k_x = jax.random.split(key)

    # Coefficient = weight_c * randn(n, n)   (deterministic, in-script init)
    coefficient = weight_c * jax.random.normal(k_coef, (n, n), dtype=jnp.float32)
    x = jax.random.normal(k_x, (n, d), dtype=jnp.float32)

    # 1) Small-problem / collapsed-K path (grid degenerates to a single step).
    y = jax.block_until_ready(self_expression(coefficient, x))
    y_ref = coefficient @ x
    assert y.shape == (n, d)
    assert jnp.allclose(y, y_ref, atol=1e-5, rtol=1e-5), "mismatch vs reference (f32)"

    # 2) Tiled-reduction path (explicit small tiles force the 3-D accumulator grid).
    n2, d2 = 256, 384
    c2 = weight_c * jax.random.normal(jax.random.PRNGKey(1), (n2, n2), dtype=jnp.float32)
    x2 = jax.random.normal(jax.random.PRNGKey(2), (n2, d2), dtype=jnp.float32)
    y2 = jax.block_until_ready(self_expression(c2, x2, tm=128, tn=128, tk=128))
    assert jnp.allclose(y2, c2 @ x2, atol=2e-5, rtol=1e-3), "mismatch vs reference (tiled)"

    # 3) bf16-input path (f32 accumulation), compared against the identically
    #    rounded XLA reference.
    y3 = jax.block_until_ready(self_expression(coefficient, x, compute_dtype=jnp.bfloat16))
    ref3 = jnp.dot(
        coefficient.astype(jnp.bfloat16),
        x.astype(jnp.bfloat16),
        preferred_element_type=jnp.float32,
    )
    assert jnp.allclose(y3, ref3, atol=1e-6, rtol=1e-4), "mismatch vs reference (bf16)"

    print("KERNEL_OK")
</pallas_src>

<mosaic_0001>
module attributes {stable_mosaic.version = 11 : i64} {
  func.func @_self_expression_kernel(%arg0: i32, %arg1: i32, %arg2: memref<128x128xf32, #tpu.memory_space<vmem>>, %arg3: memref<128x256xf32, #tpu.memory_space<vmem>>, %arg4: memref<128x256xf32, #tpu.memory_space<vmem>>) attributes {dimension_semantics = [#tpu.dimension_semantics<parallel>, #tpu.dimension_semantics<parallel>], iteration_bounds = array<i64: 1, 1>, scalar_prefetch = 0 : i64, scratch_operands = 0 : i64, tpu.core_type = #tpu.core_type<tc>, window_params = [{transform_indices = @transform_0, window_bounds = array<i64: 128, 128>}, {transform_indices = @transform_1, window_bounds = array<i64: 128, 256>}, {transform_indices = @transform_2, window_bounds = array<i64: 128, 256>}]} {
    %c0 = arith.constant 0 : index
    %c0_0 = arith.constant 0 : index
    %0 = vector.load %arg2[%c0, %c0_0] : memref<128x128xf32, #tpu.memory_space<vmem>>, vector<128x128xf32>
    %c0_1 = arith.constant 0 : index
    %c0_2 = arith.constant 0 : index
    %1 = vector.load %arg3[%c0_1, %c0_2] : memref<128x256xf32, #tpu.memory_space<vmem>>, vector<128x256xf32>
    %cst = arith.constant dense<0.000000e+00> : vector<128x256xf32>
    %2 = tpu.matmul %0, %1, %cst {dimension_numbers = #tpu.dot_dimension_numbers<[1], [0], [0], [1], [0, 0, 1, 1], [], []>} : vector<128x128xf32>, vector<128x256xf32>, vector<128x256xf32> -> vector<128x256xf32>
    %c0_3 = arith.constant 0 : index
    %c0_4 = arith.constant 0 : index
    %3 = vector.load %arg4[%c0_3, %c0_4] : memref<128x256xf32, #tpu.memory_space<vmem>>, vector<128x256xf32>
    tpu.vector_store %arg4[%c0_3, %c0_4], %2 {strides = array<i32>} : memref<128x256xf32, #tpu.memory_space<vmem>>, vector<128x256xf32>,
    return
  }
  func.func @transform_0(%arg0: i32, %arg1: i32) -> (i32, i32) {
    %c0_i32 = arith.constant 0 : i32
    %c0_i32_0 = arith.constant 0 : i32
    return %arg0, %c0_i32 : i32, i32
  }
  func.func @transform_1(%arg0: i32, %arg1: i32) -> (i32, i32) {
    %c0_i32 = arith.constant 0 : i32
    %c0_i32_0 = arith.constant 0 : i32
    return %c0_i32, %arg1 : i32, i32
  }
  func.func @transform_2(%arg0: i32, %arg1: i32) -> (i32, i32) {
    %c0_i32 = arith.constant 0 : i32
    return %arg0, %arg1 : i32, i32
  }
}

</mosaic_0001>

<llo_original>
// kernel: self_expression.1
$region0: #{self_expression.1}
  #allocation0 [shape = 'u32[]', space=smem, size = 0x4, offset = 0x4, fixed_abs, tag = 'smem constant byte address 0x4 - core index']
  #allocation1 [shape = 'u32[72,128]{1,0:T(1,128)}', space=vmem, size = 0x9000, scoped, tag = 'internal scratch']
  %s0 = inlined_call_operand.hbm [shape: f32[128,128], index: 0, kind: input, shape index: {}]
  %s1 = inlined_call_operand.hbm [shape: f32[128,256], index: 1, kind: input, shape index: {}]
  %s2 = inlined_call_operand.hbm [shape: f32[128,256], index: 2, kind: output, shape index: {}]
  %s3 = sld [smem:[#allocation0]]
  $region26: #{self_expression.1} parent=0
    _
  %s5 = ssub.s32 1, %s3
  %s6 = scalar_select 0, %s5, %s3
  $region1: #{self_expression.1} parent=0
    #allocation2 [shape = 'u8[65536]{0}', space=vmem, size = 0x10000, scoped, tag = 'input window, operand 0, single buffered']
    #allocation3 [shape = 's32[1]{0}', space=sflag, size = 0x4, scoped, tag = 'scoped memory for self_expression.1']
    #allocation4 [shape = 's32[1]{0}', space=sflag, size = 0x4, scoped, tag = 'scoped memory for self_expression.1']
    #allocation5 [shape = 'u8[131072]{0}', space=vmem, size = 0x20000, scoped, tag = 'input window, operand 1, single buffered']
    #allocation6 [shape = 's32[1]{0}', space=sflag, size = 0x4, scoped, tag = 'scoped memory for self_expression.1']
    #allocation7 [shape = 'u8[131072]{0}', space=vmem, size = 0x20000, scoped, tag = 'output window, operand 0, single buffered']
    %7 = vsyncpa [#allocation3], 0
    %8 = vsyncpa [#allocation6], 0
    %9 = vsyncpa [#allocation4], 0
    // Predicated region
    $region2: #{self_expression.1} parent=1 // pred_check
      _
    $region3: #{self_expression.1} parent=1 // pred_check_branch
      %11 = sbr.rel (0) target = $region5
    $region4: #{self_expression.1} parent=1 // pred_region
      %13 = vsyncadd [#allocation3], 0
      %s14 = sshll.u32 %s0, 4
      %s15 = int_to_ptr.hbm [resolvable:$true] %s14
      %s16 = sshll.u32 [#allocation2], 4
      %s17 = int_to_ptr.vmem [resolvable:$true] %s16
      %22 = dma.hbm_to_vmem [thread:$0]  %s15, 2048, %s17, [#allocation3], 128, 128, 8
    $region5: #{self_expression.1} parent=1 // pred_fallthru
      _
    // Predicated region
    $region6: #{self_expression.1} parent=1 // pred_check
      _
    $region7: #{self_expression.1} parent=1 // pred_check_branch
      %24 = sbr.rel (0) target = $region9
    $region8: #{self_expression.1} parent=1 // pred_region
      %26 = vsyncadd [#allocation6], 0
      %s27 = sshll.u32 %s1, 4
      %s28 = int_to_ptr.hbm [resolvable:$true] %s27
      %s29 = sshll.u32 [#allocation5], 4
      %s30 = int_to_ptr.vmem [resolvable:$true] %s29
      %35 = dma.hbm_to_vmem [thread:$0]  %s28, 4096, %s30, [#allocation6], 256, 256, 16
    $region9: #{self_expression.1} parent=1 // pred_fallthru
      _
    // Predicated region
    $region10: #{self_expression.1} parent=1 // pred_check
      _
    $region11: #{self_expression.1} parent=1 // pred_check_branch
      %37 = sbr.rel (0) target = $region13
    $region12: #{self_expression.1} parent=1 // pred_region
      %39 = dma.done [#allocation3], 2048
    $region13: #{self_expression.1} parent=1 // pred_fallthru
      _
    // Predicated region
    $region14: #{self_expression.1} parent=1 // pred_check
      _
    $region15: #{self_expression.1} parent=1 // pred_check_branch
      %41 = sbr.rel (0) target = $region17
    $region16: #{self_expression.1} parent=1 // pred_region
      %43 = dma.done [#allocation6], 4096
    $region17: #{self_expression.1} parent=1 // pred_fallthru
      _
    %v44 = vld [vmem:[#allocation2] sm:$0xff]
    %v45 = vld [vmem:[#allocation2 + $0x8] sm:$0xff]
    %v46 = vld [vmem:[#allocation2 + $0x10] sm:$0xff]
    %v47 = vld [vmem:[#allocation2 + $0x18] sm:$0xff]
    %v48 = vld [vmem:[#allocation2 + $0x20] sm:$0xff]
    %v49 = vld [vmem:[#allocation2 + $0x28] sm:$0xff]
    %v50 = vld [vmem:[#allocation2 + $0x30] sm:$0xff]
    %v51 = vld [vmem:[#allocation2 + $0x38] sm:$0xff]
    %v52 = vld [vmem:[#allocation2 + $0x40] sm:$0xff]
    %v53 = vld [vmem:[#allocation2 + $0x48] sm:$0xff]
    %v54 = vld [vmem:[#allocation2 + $0x50] sm:$0xff]
    %v55 = vld [vmem:[#allocation2 + $0x58] sm:$0xff]
    %v56 = vld [vmem:[#allocation2 + $0x60] sm:$0xff]
    %v57 = vld [vmem:[#allocation2 + $0x68] sm:$0xff]
    %v58 = vld [vmem:[#allocation2 + $0x70] sm:$0xff]
    %v59 = vld [vmem:[#allocation2 + $0x78] sm:$0xff]
    %v60 = vld [vmem:[#allocation5] sm:$0xff]
    %v61 = vld [vmem:[#allocation5 + $0x8] sm:$0xff]
    %v62 = vld [vmem:[#allocation5 + $0x10] sm:$0xff]
    %v63 = vld [vmem:[#allocation5 + $0x18] sm:$0xff]
    %v64 = vld [vmem:[#allocation5 + $0x20] sm:$0xff]
    %v65 = vld [vmem:[#allocation5 + $0x28] sm:$0xff]
    %v66 = vld [vmem:[#allocation5 + $0x30] sm:$0xff]
    %v67 = vld [vmem:[#allocation5 + $0x38] sm:$0xff]
    %v68 = vld [vmem:[#allocation5 + $0x40] sm:$0xff]
    %v69 = vld [vmem:[#allocation5 + $0x48] sm:$0xff]
    %v70 = vld [vmem:[#allocation5 + $0x50] sm:$0xff]
    %v71 = vld [vmem:[#allocation5 + $0x58] sm:$0xff]
    %v72 = vld [vmem:[#allocation5 + $0x60] sm:$0xff]
    %v73 = vld [vmem:[#allocation5 + $0x68] sm:$0xff]
    %v74 = vld [vmem:[#allocation5 + $0x70] sm:$0xff]
    %v75 = vld [vmem:[#allocation5 + $0x78] sm:$0xff]
    %v76 = vld [vmem:[#allocation5 + $0x80] sm:$0xff]
    %v77 = vld [vmem:[#allocation5 + $0x88] sm:$0xff]
    %v78 = vld [vmem:[#allocation5 + $0x90] sm:$0xff]
    %v79 = vld [vmem:[#allocation5 + $0x98] sm:$0xff]
    %v80 = vld [vmem:[#allocation5 + $0xa0] sm:$0xff]
    %v81 = vld [vmem:[#allocation5 + $0xa8] sm:$0xff]
    %v82 = vld [vmem:[#allocation5 + $0xb0] sm:$0xff]
    %v83 = vld [vmem:[#allocation5 + $0xb8] sm:$0xff]
    %v84 = vld [vmem:[#allocation5 + $0xc0] sm:$0xff]
    %v85 = vld [vmem:[#allocation5 + $0xc8] sm:$0xff]
    %v86 = vld [vmem:[#allocation5 + $0xd0] sm:$0xff]
    %v87 = vld [vmem:[#allocation5 + $0xd8] sm:$0xff]
    %v88 = vld [vmem:[#allocation5 + $0xe0] sm:$0xff]
    %v89 = vld [vmem:[#allocation5 + $0xe8] sm:$0xff]
    %v90 = vld [vmem:[#allocation5 + $0xf0] sm:$0xff]
    %v91 = vld [vmem:[#allocation5 + $0xf8] sm:$0xff]
    %92 = vmatpush.msra.mxu0 %v90
    %93 = vmatpush.msra.mxu0 %v88
    %94 = vmatpush.msra.mxu0 %v86
    %95 = vmatpush.msra.mxu0 %v84
    %96 = vmatpush.msra.mxu0 %v82
    %97 = vmatpush.msra.mxu0 %v80
    %98 = vmatpush.msra.mxu0 %v78
    %99 = vmatpush.msra.mxu0 %v76
    %100 = vmatpush.msra.mxu0 %v74
    %101 = vmatpush.msra.mxu0 %v72
    %102 = vmatpush.msra.mxu0 %v70
    %103 = vmatpush.msra.mxu0 %v68
    %104 = vmatpush.msra.mxu0 %v66
    %105 = vmatpush.msra.mxu0 %v64
    %106 = vmatpush.msra.mxu0 %v62
    %107 = vmatpush.msra.mxu0 %v60
    %108 = vmatmul.f32.gmra.mxu0 %v44
    %v109 = vpop.f32.mrf.mxu0
    %v110 = vadd.f32 0.0, %v109
    %111 = vmatmul.f32.gmra.mxu0 %v45
    %v112 = vpop.f32.mrf.mxu0
    %v113 = vadd.f32 0.0, %v112
    %114 = vmatmul.f32.gmra.mxu0 %v46
    %v115 = vpop.f32.mrf.mxu0
    %v116 = vadd.f32 0.0, %v115
    %117 = vmatmul.f32.gmra.mxu0 %v47
    %v118 = vpop.f32.mrf.mxu0
    %v119 = vadd.f32 0.0, %v118
    %120 = vmatmul.f32.gmra.mxu0 %v48
    %v121 = vpop.f32.mrf.mxu0
    %v122 = vadd.f32 0.0, %v121
    %123 = vmatmul.f32.gmra.mxu0 %v49
    %v124 = vpop.f32.mrf.mxu0
    %v125 = vadd.f32 0.0, %v124
    %126 = vmatmul.f32.gmra.mxu0 %v50
    %v127 = vpop.f32.mrf.mxu0
    %v128 = vadd.f32 0.0, %v127
    %129 = vmatmul.f32.gmra.mxu0 %v51
    %v130 = vpop.f32.mrf.mxu0
    %v131 = vadd.f32 0.0, %v130
    %132 = vmatmul.f32.gmra.mxu0 %v52
    %v133 = vpop.f32.mrf.mxu0
    %v134 = vadd.f32 0.0, %v133
    %135 = vmatmul.f32.gmra.mxu0 %v53
    %v136 = vpop.f32.mrf.mxu0
    %v137 = vadd.f32 0.0, %v136
    %138 = vmatmul.f32.gmra.mxu0 %v54
    %v139 = vpop.f32.mrf.mxu0
    %v140 = vadd.f32 0.0, %v139
    %141 = vmatmul.f32.gmra.mxu0 %v55
    %v142 = vpop.f32.mrf.mxu0
    %v143 = vadd.f32 0.0, %v142
    %144 = vmatmul.f32.gmra.mxu0 %v56
    %v145 = vpop.f32.mrf.mxu0
    %v146 = vadd.f32 0.0, %v145
    %147 = vmatmul.f32.gmra.mxu0 %v57
    %v148 = vpop.f32.mrf.mxu0
    %v149 = vadd.f32 0.0, %v148
    %150 = vmatmul.f32.gmra.mxu0 %v58
    %v151 = vpop.f32.mrf.mxu0
    %v152 = vadd.f32 0.0, %v151
    %153 = vmatmul.f32.gmra.mxu0 %v59
    %v154 = vpop.f32.mrf.mxu0
    %v155 = vadd.f32 0.0, %v154
    %156 = vdwg.mxu0
    %157 = vmatpush.msra.mxu0 %v91
    %158 = vmatpush.msra.mxu0 %v89
    %159 = vmatpush.msra.mxu0 %v87
    %160 = vmatpush.msra.mxu0 %v85
    %161 = vmatpush.msra.mxu0 %v83
    %162 = vmatpush.msra.mxu0 %v81
    %163 = vmatpush.msra.mxu0 %v79
    %164 = vmatpush.msra.mxu0 %v77
    %165 = vmatpush.msra.mxu0 %v75
    %166 = vmatpush.msra.mxu0 %v73
    %167 = vmatpush.msra.mxu0 %v71
    %168 = vmatpush.msra.mxu0 %v69
    %169 = vmatpush.msra.mxu0 %v67
    %170 = vmatpush.msra.mxu0 %v65
    %171 = vmatpush.msra.mxu0 %v63
    %172 = vmatpush.msra.mxu0 %v61
    %173 = vmatmul.f32.gmra.mxu0 %v44
    %v174 = vpop.f32.mrf.mxu0
    %v175 = vadd.f32 0.0, %v174
    %176 = vmatmul.f32.gmra.mxu0 %v45
    %v177 = vpop.f32.mrf.mxu0
    %v178 = vadd.f32 0.0, %v177
    %179 = vmatmul.f32.gmra.mxu0 %v46
    %v180 = vpop.f32.mrf.mxu0
    %v181 = vadd.f32 0.0, %v180
    %182 = vmatmul.f32.gmra.mxu0 %v47
    %v183 = vpop.f32.mrf.mxu0
    %v184 = vadd.f32 0.0, %v183
    %185 = vmatmul.f32.gmra.mxu0 %v48
    %v186 = vpop.f32.mrf.mxu0
    %v187 = vadd.f32 0.0, %v186
    %188 = vmatmul.f32.gmra.mxu0 %v49
    %v189 = vpop.f32.mrf.mxu0
    %v190 = vadd.f32 0.0, %v189
    %191 = vmatmul.f32.gmra.mxu0 %v50
    %v192 = vpop.f32.mrf.mxu0
    %v193 = vadd.f32 0.0, %v192
    %194 = vmatmul.f32.gmra.mxu0 %v51
    %v195 = vpop.f32.mrf.mxu0
    %v196 = vadd.f32 0.0, %v195
    %197 = vmatmul.f32.gmra.mxu0 %v52
    %v198 = vpop.f32.mrf.mxu0
    %v199 = vadd.f32 0.0, %v198
    %200 = vmatmul.f32.gmra.mxu0 %v53
    %v201 = vpop.f32.mrf.mxu0
    %v202 = vadd.f32 0.0, %v201
    %203 = vmatmul.f32.gmra.mxu0 %v54
    %v204 = vpop.f32.mrf.mxu0
    %v205 = vadd.f32 0.0, %v204
    %206 = vmatmul.f32.gmra.mxu0 %v55
    %v207 = vpop.f32.mrf.mxu0
    %v208 = vadd.f32 0.0, %v207
    %209 = vmatmul.f32.gmra.mxu0 %v56
    %v210 = vpop.f32.mrf.mxu0
    %v211 = vadd.f32 0.0, %v210
    %212 = vmatmul.f32.gmra.mxu0 %v57
    %v213 = vpop.f32.mrf.mxu0
    %v214 = vadd.f32 0.0, %v213
    %215 = vmatmul.f32.gmra.mxu0 %v58
    %v216 = vpop.f32.mrf.mxu0
    %v217 = vadd.f32 0.0, %v216
    %218 = vmatmul.f32.gmra.mxu0 %v59
    %v219 = vpop.f32.mrf.mxu0
    %v220 = vadd.f32 0.0, %v219
    %221 = vdwg.mxu0
    %222 = vst [vmem:[#allocation7] sm:$0xff] %v110
    %223 = vst [vmem:[#allocation7 + $0x8] sm:$0xff] %v175
    %224 = vst [vmem:[#allocation7 + $0x10] sm:$0xff] %v113
    %225 = vst [vmem:[#allocation7 + $0x18] sm:$0xff] %v178
    %226 = vst [vmem:[#allocation7 + $0x20] sm:$0xff] %v116
    %227 = vst [vmem:[#allocation7 + $0x28] sm:$0xff] %v181
    %228 = vst [vmem:[#allocation7 + $0x30] sm:$0xff] %v119
    %229 = vst [vmem:[#allocation7 + $0x38] sm:$0xff] %v184
    %230 = vst [vmem:[#allocation7 + $0x40] sm:$0xff] %v122
    %231 = vst [vmem:[#allocation7 + $0x48] sm:$0xff] %v187
    %232 = vst [vmem:[#allocation7 + $0x50] sm:$0xff] %v125
    %233 = vst [vmem:[#allocation7 + $0x58] sm:$0xff] %v190
    %234 = vst [vmem:[#allocation7 + $0x60] sm:$0xff] %v128
    %235 = vst [vmem:[#allocation7 + $0x68] sm:$0xff] %v193
    %236 = vst [vmem:[#allocation7 + $0x70] sm:$0xff] %v131
    %237 = vst [vmem:[#allocation7 + $0x78] sm:$0xff] %v196
    %238 = vst [vmem:[#allocation7 + $0x80] sm:$0xff] %v134
    %239 = vst [vmem:[#allocation7 + $0x88] sm:$0xff] %v199
    %240 = vst [vmem:[#allocation7 + $0x90] sm:$0xff] %v137
    %241 = vst [vmem:[#allocation7 + $0x98] sm:$0xff] %v202
    %242 = vst [vmem:[#allocation7 + $0xa0] sm:$0xff] %v140
    %243 = vst [vmem:[#allocation7 + $0xa8] sm:$0xff] %v205
    %244 = vst [vmem:[#allocation7 + $0xb0] sm:$0xff] %v143
    %245 = vst [vmem:[#allocation7 + $0xb8] sm:$0xff] %v208
    %246 = vst [vmem:[#allocation7 + $0xc0] sm:$0xff] %v146
    %247 = vst [vmem:[#allocation7 + $0xc8] sm:$0xff] %v211
    %248 = vst [vmem:[#allocation7 + $0xd0] sm:$0xff] %v149
    %249 = vst [vmem:[#allocation7 + $0xd8] sm:$0xff] %v214
    %250 = vst [vmem:[#allocation7 + $0xe0] sm:$0xff] %v152
    %251 = vst [vmem:[#allocation7 + $0xe8] sm:$0xff] %v217
    %252 = vst [vmem:[#allocation7 + $0xf0] sm:$0xff] %v155
    %253 = vst [vmem:[#allocation7 + $0xf8] sm:$0xff] %v220
    // Predicated region
    $region18: #{self_expression.1} parent=1 // pred_check
      _
    $region19: #{self_expression.1} parent=1 // pred_check_branch
      %255 = sbr.rel (0) target = $region21
    $region20: #{self_expression.1} parent=1 // pred_region
      %257 = vsyncadd [#allocation4], 0
      %s258 = sshll.u32 [#allocation7], 4
      %s259 = int_to_ptr.vmem [resolvable:$true] %s258
      %s260 = sshll.u32 %s2, 4
      %s261 = int_to_ptr.hbm [resolvable:$true] %s260
      %266 = dma.vmem_to_hbm [thread:$0]  %s259, 4096, %s261, [#allocation4], 256, 256, 16
    $region21: #{self_expression.1} parent=1 // pred_fallthru
      _
    // Predicated region
    $region22: #{self_expression.1} parent=1 // pred_check
      _
    $region23: #{self_expression.1} parent=1 // pred_check_branch
      %268 = sbr.rel (0) target = $region25
    $region24: #{self_expression.1} parent=1 // pred_region
      %270 = dma.done [#allocation4], 4096
    $region25: #{self_expression.1} parent=1 // pred_fallthru
      _
    %271 = vsyncpa [#allocation3], 1
    %272 = vsyncpa [#allocation6], 1
    %273 = vsyncpa [#allocation4], 1

</llo_original>
